<compile_context>
chip_gen: v7x
topology: tpu7x:2x2x1
jax: 0.10.0
libtpu: 0.0.40
codegen_flags: <defaults>
</compile_context>

<pallas_src>
import functools
import math

import jax
import jax.numpy as jnp
from jax import lax
from jax.experimental import pallas as pl
from jax.experimental.pallas import tpu as pltpu


# ---------------------------------------------------------------------------
# Positional encoding (glue, trace-time) — mirrors PositionalEncodingPermute2D.
# Returned channel-major: (c, n) with n = h*w (batch-invariant).
# ---------------------------------------------------------------------------
def positional_encoding_cn(c, h, w, dtype=jnp.float32):
    channels = int(math.ceil(c / 2))
    inv_freq = 1.0 / (
        10000.0 ** (jnp.arange(0, channels, 2, dtype=jnp.float32) / channels)
    )
    pos_x = jnp.arange(h, dtype=jnp.float32)  # "x" axis == height after permute
    pos_y = jnp.arange(w, dtype=jnp.float32)
    sin_inp_x = pos_x[:, None] * inv_freq[None, :]  # (h, channels/2)
    sin_inp_y = pos_y[:, None] * inv_freq[None, :]  # (w, channels/2)
    emb_x = jnp.concatenate([jnp.sin(sin_inp_x), jnp.cos(sin_inp_x)], axis=-1)
    emb_y = jnp.concatenate([jnp.sin(sin_inp_y), jnp.cos(sin_inp_y)], axis=-1)
    emb = jnp.zeros((h, w, 2 * channels), dtype=jnp.float32)
    emb = emb.at[:, :, :channels].set(emb_x[:, None, :])
    emb = emb.at[:, :, channels : 2 * channels].set(emb_y[None, :, :])
    pe_hwc = emb[:, :, :c]                                        # (h, w, c)
    return jnp.transpose(pe_hwc, (2, 0, 1)).reshape(c, h * w).astype(dtype)


# ---------------------------------------------------------------------------
# Pallas kernel: per-(batch, key-tile) self-attention hot path (channel-major)
# ---------------------------------------------------------------------------
def _mhsa_kernel(
    x_ref,      # (1, c, n)   input block (channel-major, f32), resident across j
    pe_ref,     # (c, n)      positional encoding (f32, batch-invariant)
    w_ref,      # (3c, c)     fused [Wq^T/sqrt(c); Wk^T; Wv^T], bf16
    o_ref,      # (1, c, n)   output block (f32) — doubles as the accumulator
    qkv_ref,    # (3c, n)     scratch: fused Q/K/V (channel-major, bf16)
    *,
    c,
    block_k,
):
    j = pl.program_id(1)

    # --- init: fused QKV projection once per batch element --------------------
    @pl.when(j == 0)
    def _():
        # PE add fused in-kernel (one fewer HBM pass); cast once to bf16 for MXU.
        xp = (x_ref[0] + pe_ref[...]).astype(jnp.bfloat16)            # (c, n)
        qkv = jnp.dot(w_ref[...], xp,
                      preferred_element_type=jnp.float32)             # (3c, n) f32
        qkv_ref[...] = qkv.astype(jnp.bfloat16)                       # single scratch
        o_ref[...] = jnp.zeros_like(o_ref)                            # f32 accumulator

    # --- per key-tile attention ------------------------------------------------
    jj = pl.multiple_of(j * block_k, block_k)
    q = qkv_ref[0:c, :]                                # (c, n)  bf16 (1/sqrt(c) pre-folded)
    k_j = qkv_ref[c : 2 * c, pl.ds(jj, block_k)]       # (c, tk) bf16
    v_j = qkv_ref[2 * c : 3 * c, pl.ds(jj, block_k)]   # (c, tk) bf16

    # S^T tile: (tk, n) = K_j^T Q — contract the channel axis of both
    # channel-major operands (only a small (c, tk) transpose is implied).
    s_t = lax.dot_general(
        k_j, q, (((0,), (0,)), ((), ())), preferred_element_type=jnp.float32
    )

    # torch Softmax(dim=1) on (b, n, n) normalizes over the QUERY index, which is
    # axis 1 of s_t; every key row holds the full query extent, so the per-tile
    # stats are exact (no cross-tile online-softmax state needed).
    m = jnp.max(s_t, axis=1, keepdims=True)                           # (tk, 1)
    p = jnp.exp(s_t - m)                                              # f32, EUP
    l = jnp.sum(p, axis=1, keepdims=True)                             # (tk, 1)
    a_t = (p * pl.reciprocal(l, approx=True)).astype(jnp.bfloat16)    # EUP vrcp

    # O (channel-major, f32) accumulated directly in the resident output block:
    # (c, n) += (c, tk) @ (tk, n), MXU-native, bf16 operands, f32 accumulate.
    o_ref[0] += jnp.dot(v_j, a_t, preferred_element_type=jnp.float32)


def _choose_block_k(n):
    # Keep the (block_k, n) f32 exp/score temporaries <= ~4 MiB so the resident
    # set also fits v7x's 64 MiB VMEM; 256 matches the v6e/v7x 256x256 MXU, 128
    # matches v5e's 128x128 MXU and is the fallback.
    if n % 256 == 0 and 256 * n * 4 <= 4 * 1024 * 1024:
        return 256
    if n % 128 == 0:
        return 128
    return n  # tiny / odd n: single full-extent tile


def _default_vmem_limit_bytes():
    # ~3/4 of physical VMEM, capped at 100 MiB: ~96 MiB on v5e/v6e (128 MiB),
    # ~48 MiB on v7x (64 MiB) — leaves DMA / temporary headroom.
    try:
        phys = int(pltpu.get_tpu_info().vmem_capacity_bytes)
    except Exception:
        phys = 64 << 20
    return int(min(phys * 3 // 4, 100 << 20))


def multi_head_self_attention(x, wq, wk, wv, *, block_k=None):
    """x: (b, c, h, w) NCHW. wq/wk/wv: (c, c). Returns (b, c, h, w) float32."""
    b, c, h, w = x.shape
    n = h * w
    if c % 4 != 0:
        raise ValueError(
            "Cannot use sin/cos positional encoding with dim not divisible by 4 "
            f"(got dim={c})"
        )
    if block_k is None:
        block_k = _choose_block_k(n)
    if n % block_k != 0:
        raise ValueError(f"block_k={block_k} must divide n={n}")
    num_k_blocks = n // block_k

    # Glue (tiny, trace-time): PE table and fused transposed weight.
    x = x.astype(jnp.float32)
    pe = positional_encoding_cn(c, h, w, dtype=jnp.float32)           # (c, n)
    x_cn = x.reshape(b, c, n)                                         # free reshape
    scale = 1.0 / math.sqrt(c)
    # Fold 1/sqrt(c) into the Q rows (exact, trace-time) and cast to bf16 (MXU).
    w_fused_t = jnp.concatenate([wq.T * scale, wk.T, wv.T], axis=0).astype(
        jnp.bfloat16
    )                                                                 # (3c, c)

    kernel = functools.partial(_mhsa_kernel, c=c, block_k=block_k)

    cost = pl.CostEstimate(
        flops=b * (4 * n * n * c + 6 * c * c * n),
        transcendentals=b * n * n,
        bytes_accessed=b * 8 * c * n,
    )

    out = pl.pallas_call(
        kernel,
        out_shape=jax.ShapeDtypeStruct((b, c, n), jnp.float32),
        grid_spec=pltpu.PrefetchScalarGridSpec(
            num_scalar_prefetch=0,
            grid=(b, num_k_blocks),
            in_specs=[
                pl.BlockSpec((1, c, n), lambda bi, j: (bi, 0, 0)),    # x (resident over j)
                pl.BlockSpec((c, n), lambda bi, j: (0, 0)),           # pe (grid-invariant)
                pl.BlockSpec((3 * c, c), lambda bi, j: (0, 0)),       # fused W^T (bf16)
            ],
            out_specs=pl.BlockSpec((1, c, n), lambda bi, j: (bi, 0, 0)),
            scratch_shapes=[
                pltpu.VMEM((3 * c, n), jnp.bfloat16),  # fused Q/K/V (channel-major)
            ],
        ),
        compiler_params=pltpu.CompilerParams(
            dimension_semantics=("parallel", "arbitrary"),
            vmem_limit_bytes=_default_vmem_limit_bytes(),
        ),
        cost_estimate=cost,
    )(x_cn, pe, w_fused_t)

    return out.reshape(b, c, h, w)  # already channel-major: no transpose needed


# ---------------------------------------------------------------------------
# Pure-JAX reference (mirrors the torch module op-for-op, f32 throughout)
# ---------------------------------------------------------------------------
def _reference(x, wq, wk, wv):
    b, c, h, w = x.shape
    n = h * w
    pe = positional_encoding_cn(c, h, w, dtype=x.dtype)               # (c, n)
    xt = jnp.transpose(x.reshape(b, c, n) + pe[None], (0, 2, 1))      # (b, n, c)
    q = xt @ wq
    k = xt @ wk
    v = xt @ wv
    s = jnp.einsum("bic,bjc->bij", q, k) / math.sqrt(c)
    a = jax.nn.softmax(s, axis=1)                                     # dim=1 !
    o = jnp.einsum("bij,bjc->bic", a, v)
    return jnp.transpose(o, (0, 2, 1)).reshape(b, c, h, w)


if __name__ == "__main__":
    key = jax.random.PRNGKey(0)
    kx, kq, kk, kv = jax.random.split(key, 4)

    b, c, h, w = 2, 4, 16, 16          # c divisible by 4 (PE requirement)
    x = jax.random.normal(kx, (b, c, h, w), dtype=jnp.float32)

    # MultiHeadDense: kaiming_uniform_(a=sqrt(5)) on a square (c, c) weight
    # => Uniform(-1/sqrt(c), 1/sqrt(c)). Deterministic synthetic init.
    bound = 1.0 / math.sqrt(c)
    wq = jax.random.uniform(kq, (c, c), jnp.float32, -bound, bound)
    wk = jax.random.uniform(kk, (c, c), jnp.float32, -bound, bound)
    wv = jax.random.uniform(kv, (c, c), jnp.float32, -bound, bound)

    # block_k=128 -> two key tiles on n=256, exercising the accumulation path.
    out = multi_head_self_attention(x, wq, wk, wv, block_k=128)
    out = jax.block_until_ready(out)

    ref = jax.block_until_ready(_reference(x, wq, wk, wv))
    assert out.shape == (b, c, h, w)
    # Tolerance accounts for bf16 MXU operands and the approximate (EUP)
    # softmax reciprocal; the f32 reference is exact.
    max_err = float(jnp.max(jnp.abs(out - ref)))
    assert jnp.allclose(out, ref, atol=3e-2, rtol=3e-2), (
        f"mismatch vs reference (max err {max_err})"
    )

    print("KERNEL_OK")
</pallas_src>

<mosaic_0001>
module attributes {stable_mosaic.version = 11 : i64} {
  func.func @_mhsa_kernel(%arg0: i32, %arg1: i32, %arg2: memref<1x4x256xf32, #tpu.memory_space<vmem>>, %arg3: memref<4x256xf32, #tpu.memory_space<vmem>>, %arg4: memref<12x4xbf16, #tpu.memory_space<vmem>>, %arg5: memref<1x4x256xf32, #tpu.memory_space<vmem>>, %arg6: memref<12x256xbf16, #tpu.memory_space<vmem>>) attributes {dimension_semantics = [#tpu.dimension_semantics<parallel>, #tpu.dimension_semantics<arbitrary>], iteration_bounds = array<i64: 2, 2>, scalar_prefetch = 0 : i64, scratch_operands = 1 : i64, tpu.core_type = #tpu.core_type<tc>, window_params = [{transform_indices = @transform_0, window_bounds = array<i64: 1, 4, 256>}, {pipeline_mode = #tpu.pipeline_mode<synchronous>, transform_indices = @transform_1, window_bounds = array<i64: 4, 256>}, {pipeline_mode = #tpu.pipeline_mode<synchronous>, transform_indices = @transform_2, window_bounds = array<i64: 12, 4>}, {transform_indices = @transform_3, window_bounds = array<i64: 1, 4, 256>}]} {
    %c0_i32 = arith.constant 0 : i32
    %0 = arith.cmpi eq, %arg1, %c0_i32 : i32
    %1 = arith.extui %0 : i1 to i32
    %c0_i32_0 = arith.constant 0 : i32
    %2 = arith.cmpi ne, %1, %c0_i32_0 : i32
    scf.if %2 {
      %c0_11 = arith.constant 0 : index
      %c0_12 = arith.constant 0 : index
      %c0_13 = arith.constant 0 : index
      %29 = vector.load %arg2[%c0_11, %c0_12, %c0_13] : memref<1x4x256xf32, #tpu.memory_space<vmem>>, vector<1x4x256xf32>
      %30 = vector.shape_cast %29 : vector<1x4x256xf32> to vector<4x256xf32>
      %c0_14 = arith.constant 0 : index
      %c0_15 = arith.constant 0 : index
      %31 = vector.load %arg3[%c0_14, %c0_15] : memref<4x256xf32, #tpu.memory_space<vmem>>, vector<4x256xf32>
      %32 = arith.addf %30, %31 : vector<4x256xf32>
      %33 = arith.truncf %32 : vector<4x256xf32> to vector<4x256xbf16>
      %c0_16 = arith.constant 0 : index
      %c0_17 = arith.constant 0 : index
      %34 = vector.load %arg4[%c0_16, %c0_17] : memref<12x4xbf16, #tpu.memory_space<vmem>>, vector<12x4xbf16>
      %cst_18 = arith.constant dense<0.000000e+00> : vector<12x256xf32>
      %35 = tpu.matmul %34, %33, %cst_18 {dimension_numbers = #tpu.dot_dimension_numbers<[1], [0], [0], [1], [0, 0, 1, 1], [], []>} : vector<12x4xbf16>, vector<4x256xbf16>, vector<12x256xf32> -> vector<12x256xf32>
      %36 = arith.truncf %35 : vector<12x256xf32> to vector<12x256xbf16>
      %c0_19 = arith.constant 0 : index
      %c0_20 = arith.constant 0 : index
      %37 = vector.load %arg6[%c0_19, %c0_20] : memref<12x256xbf16, #tpu.memory_space<vmem>>, vector<12x256xbf16>
      tpu.vector_store %arg6[%c0_19, %c0_20], %36 {strides = array<i32>} : memref<12x256xbf16, #tpu.memory_space<vmem>>, vector<12x256xbf16>,
      %cst_21 = arith.constant 0.000000e+00 : f32
      %38 = vector.broadcast %cst_21 : f32 to vector<1x4x256xf32>
      %c0_22 = arith.constant 0 : index
      %c0_23 = arith.constant 0 : index
      %c0_24 = arith.constant 0 : index
      %39 = vector.load %arg5[%c0_22, %c0_23, %c0_24] : memref<1x4x256xf32, #tpu.memory_space<vmem>>, vector<1x4x256xf32>
      tpu.vector_store %arg5[%c0_22, %c0_23, %c0_24], %38 {strides = array<i32>} : memref<1x4x256xf32, #tpu.memory_space<vmem>>, vector<1x4x256xf32>,
    } else {
    }
    %c128_i32 = arith.constant 128 : i32
    %3 = arith.muli %arg1, %c128_i32 : i32
    %4 = tpu.assume_multiple %3, 128 : i32
    %c0 = arith.constant 0 : index
    %c0_1 = arith.constant 0 : index
    %5 = vector.load %arg6[%c0, %c0_1] : memref<12x256xbf16, #tpu.memory_space<vmem>>, vector<4x256xbf16>
    %c4 = arith.constant 4 : index
    %6 = arith.index_cast %4 : i32 to index
    %7 = vector.load %arg6[%c4, %6] : memref<12x256xbf16, #tpu.memory_space<vmem>>, vector<4x128xbf16>
    %c8 = arith.constant 8 : index
    %8 = arith.index_cast %4 : i32 to index
    %9 = vector.load %arg6[%c8, %8] : memref<12x256xbf16, #tpu.memory_space<vmem>>, vector<4x128xbf16>
    %cst = arith.constant dense<0.000000e+00> : vector<128x256xf32>
    %10 = tpu.matmul %7, %5, %cst {dimension_numbers = #tpu.dot_dimension_numbers<[0], [0], [1], [1], [0, 1, 1, 1], [], []>} : vector<4x128xbf16>, vector<4x256xbf16>, vector<128x256xf32> -> vector<128x256xf32>
    %cst_2 = arith.constant dense<0xFF800000> : vector<128xf32>
    %11 = vector.multi_reduction <maximumf>, %10, %cst_2 [1] : vector<128x256xf32> to vector<128xf32>
    %12 = vector.shape_cast %11 : vector<128xf32> to vector<128x1xf32>
    %13 = vector.broadcast %12 : vector<128x1xf32> to vector<128x256xf32>
    %14 = arith.subf %10, %13 : vector<128x256xf32>
    %15 = math.exp %14 : vector<128x256xf32>
    %cst_3 = arith.constant dense<0.000000e+00> : vector<128xf32>
    %16 = vector.multi_reduction <add>, %15, %cst_3 [1] : vector<128x256xf32> to vector<128xf32>
    %17 = vector.shape_cast %16 : vector<128xf32> to vector<128x1xf32>
    %18 = tpu.reciprocal %17 {approx = true} : vector<128x1xf32> -> vector<128x1xf32>
    %19 = vector.broadcast %18 : vector<128x1xf32> to vector<128x256xf32>
    %20 = arith.mulf %15, %19 : vector<128x256xf32>
    %21 = arith.truncf %20 : vector<128x256xf32> to vector<128x256xbf16>
    %c0_4 = arith.constant 0 : index
    %c0_5 = arith.constant 0 : index
    %c0_6 = arith.constant 0 : index
    %22 = vector.load %arg5[%c0_4, %c0_5, %c0_6] : memref<1x4x256xf32, #tpu.memory_space<vmem>>, vector<1x4x256xf32>
    %23 = vector.shape_cast %22 : vector<1x4x256xf32> to vector<4x256xf32>
    %cst_7 = arith.constant dense<0.000000e+00> : vector<4x256xf32>
    %24 = tpu.matmul %9, %21, %cst_7 {dimension_numbers = #tpu.dot_dimension_numbers<[1], [0], [0], [1], [0, 0, 1, 1], [], []>} : vector<4x128xbf16>, vector<128x256xbf16>, vector<4x256xf32> -> vector<4x256xf32>
    %25 = arith.addf %23, %24 : vector<4x256xf32>
    %c0_8 = arith.constant 0 : index
    %c0_9 = arith.constant 0 : index
    %c0_10 = arith.constant 0 : index
    %26 = vector.load %arg5[%c0_8, %c0_9, %c0_10] : memref<1x4x256xf32, #tpu.memory_space<vmem>>, vector<1x4x256xf32>
    %27 = vector.shape_cast %26 : vector<1x4x256xf32> to vector<4x256xf32>
    %28 = vector.shape_cast %25 : vector<4x256xf32> to vector<1x4x256xf32>
    tpu.vector_store %arg5[%c0_8, %c0_9, %c0_10], %28 {strides = array<i32>} : memref<1x4x256xf32, #tpu.memory_space<vmem>>, vector<1x4x256xf32>,
    return
  }
  func.func @transform_0(%arg0: i32, %arg1: i32) -> (i32, i32, i32) {
    %c0_i32 = arith.constant 0 : i32
    %c0_i32_0 = arith.constant 0 : i32
    %c0_i32_1 = arith.constant 0 : i32
    return %arg0, %c0_i32, %c0_i32_0 : i32, i32, i32
  }
  func.func @transform_1(%arg0: i32, %arg1: i32) -> (i32, i32) {
    %c0_i32 = arith.constant 0 : i32
    %c0_i32_0 = arith.constant 0 : i32
    %c0_i32_1 = arith.constant 0 : i32
    return %c0_i32, %c0_i32_0 : i32, i32
  }
  func.func @transform_2(%arg0: i32, %arg1: i32) -> (i32, i32) {
    %c0_i32 = arith.constant 0 : i32
    %c0_i32_0 = arith.constant 0 : i32
    %c0_i32_1 = arith.constant 0 : i32
    return %c0_i32, %c0_i32_0 : i32, i32
  }
  func.func @transform_3(%arg0: i32, %arg1: i32) -> (i32, i32, i32) {
    %c0_i32 = arith.constant 0 : i32
    %c0_i32_0 = arith.constant 0 : i32
    %c0_i32_1 = arith.constant 0 : i32
    return %arg0, %c0_i32, %c0_i32_0 : i32, i32, i32
  }
}

</mosaic_0001>

<llo_original>
// kernel: tpu_custom_call.1
$region0: #{tpu_custom_call.1}
  #allocation0 [shape = 'u32[]', space=smem, size = 0x4, offset = 0x4, fixed_abs, tag = 'smem constant byte address 0x4 - core index']
  #allocation1 [shape = 'u32[144,128]{1,0:T(1,128)}', space=vmem, size = 0x12000, scoped, tag = 'internal scratch']
  #allocation2 [shape = 'bf16[12,256]{1,0:T(8,128)(2,1)}', space=vmem, size = 0x2000, scoped, tag = 'scratch operand']
  %s0 = inlined_call_operand.hbm [shape: f32[2,4,256], index: 0, kind: input, shape index: {}]
  %s1 = inlined_call_operand.vmem [shape: f32[4,256], index: 1, kind: input, shape index: {}]
  %s2 = inlined_call_operand.vmem [shape: bf16[12,4], index: 2, kind: input, shape index: {}]
  %s3 = inlined_call_operand.hbm [shape: f32[2,4,256], index: 3, kind: output, shape index: {}]
  %s4 = sld [smem:[#allocation0]]
  $region53: #{tpu_custom_call.1} parent=0
    _
  %s6 = ssub.s32 1, %s4
  %s7 = scalar_select 0, %s6, %s4
  $region1: #{tpu_custom_call.1} parent=0
    #allocation3 [shape = 'u8[8192]{0}', space=vmem, size = 0x2000, scoped, tag = 'input window, operand 0']
    #allocation4 [shape = 's32[2]{0}', space=sflag, size = 0x8, scoped, tag = 'scoped memory for tpu_custom_call.1']
    #allocation5 [shape = 's32[2]{0}', space=sflag, size = 0x8, scoped, tag = 'scoped memory for tpu_custom_call.1']
    #allocation6 [shape = 'u8[8192]{0}', space=vmem, size = 0x2000, scoped, tag = 'output window, operand 0']
    %8 = vsyncpa [#allocation4], 0
    %s9 = scalar_lea.sflag [#allocation4], 1
    %10 = vsyncpa %s9, 0
    %11 = vsyncpa [#allocation5], 0
    %s12 = scalar_lea.sflag [#allocation5], 1
    %13 = vsyncpa %s12, 0
    loop: start=0, step=1, limit=6
    $region2: #{tpu_custom_call.1} parent=1 // loop_pre_header
      _
    $region3: #{tpu_custom_call.1} parent=1 // loop_header
      %s15 = sphi 0, %s19
      %p16 = scmp.ge.s32.totalorder %s15, 6
      %s22 = sphi 0, %s34
      %s23 = sphi 0, %s30
      %s24 = sphi 0, %s22
      %s25 = sphi 0, %s23
      %s26 = sphi 0, %s24
      %s27 = sphi 0, %s25
      %s37 = sphi 0, %s39
      %s40 = sphi 0, %s37
      %s41 = sphi 0, %s40
      %s57 = sphi 0, %s41
      %s61 = sphi 0, %s61
      %s63 = sphi 0, %s61
      %s64 = sphi 0, %s63
      %s78 = sphi 0, %s64
      %s82 = sphi 0, %s82
      %s84 = sphi 0, %s82
      %s85 = sphi 0, %s84
      %s99 = sphi 0, %s85
      %s105 = sphi 0, %s107
      %s108 = sphi 0, %s105
      %s109 = sphi 0, %s108
      %s125 = sphi 0, %s109
    $region4: #{tpu_custom_call.1} parent=1 // loop_header_branch
      %18 = sbr.rel (%p16) target = $region8
    $region5: #{tpu_custom_call.1} parent=1 // loop_body
      %s20 = ssub.s32 %s15, 1
      %s21 = ssub.s32 %s15, 2
      %s28 = sadd.s32 1, %s23
      %p29 = scmp.ge.s32.totalorder %s28, 2
      %s30 = scalar_select %p29, 0, %s28
      %s31 = sadd.s32 1, %s22
      %s32 = scalar_select %p29, %s31, %s22
      %p33 = scmp.ge.s32.totalorder %s32, 2
      %s34 = scalar_select %p33, 0, %s32
      %s35 = ssub.s32 %s22, %s34
      %p36 = scmp.eq.s32.totalorder %s35, 0
      %s38 = sadd.s32 %s37, 1
      %s39 = scalar_select %p36, %s37, %s38
      %p42 = pneg %p36
      %p43 = scmp.eq.s32.totalorder %s15, 3
      %p44 = por %p42, %p43
      %p45 = scmp.ne.s32.totalorder %s37, %s40
      %p46 = scmp.eq.s32.totalorder %s15, 0
      %p47 = por %p45, %p46
      %p48 = scmp.ne.s32.totalorder %s37, %s40
      %p49 = scmp.eq.s32.totalorder %s20, 3
      %p50 = por %p48, %p49
      %p51 = scmp.ne.s32.totalorder %s40, %s41
      %p52 = scmp.eq.s32.totalorder %s20, 0
      %p53 = por %p51, %p52
      %p54 = scmp.ne.s32.totalorder %s40, %s41
      %p55 = scmp.eq.s32.totalorder %s21, 3
      %p56 = por %p54, %p55
      %p58 = scmp.ne.s32.totalorder %s41, %s57
      %p59 = scmp.eq.s32.totalorder %s21, 0
      %p60 = por %p58, %p59
      %s62 = sadd.s32 %s61, 1
      %p65 = scmp.eq.s32.totalorder %s15, 3
      %p66 = scmp.ne.s32.totalorder %s61, %s63
      %p67 = scmp.eq.s32.totalorder %s15, 0
      %p68 = por %p66, %p67
      %p69 = scmp.ne.s32.totalorder %s61, %s63
      %p70 = scmp.eq.s32.totalorder %s20, 3
      %p71 = por %p69, %p70
      %p72 = scmp.ne.s32.totalorder %s63, %s64
      %p73 = scmp.eq.s32.totalorder %s20, 0
      %p74 = por %p72, %p73
      %p75 = scmp.ne.s32.totalorder %s63, %s64
      %p76 = scmp.eq.s32.totalorder %s21, 3
      %p77 = por %p75, %p76
      %p79 = scmp.ne.s32.totalorder %s64, %s78
      %p80 = scmp.eq.s32.totalorder %s21, 0
      %p81 = por %p79, %p80
      %s83 = sadd.s32 %s82, 1
      %p86 = scmp.eq.s32.totalorder %s15, 3
      %p87 = scmp.ne.s32.totalorder %s82, %s84
      %p88 = scmp.eq.s32.totalorder %s15, 0
      %p89 = por %p87, %p88
      %p90 = scmp.ne.s32.totalorder %s82, %s84
      %p91 = scmp.eq.s32.totalorder %s20, 3
      %p92 = por %p90, %p91
      %p93 = scmp.ne.s32.totalorder %s84, %s85
      %p94 = scmp.eq.s32.totalorder %s20, 0
      %p95 = por %p93, %p94
      %p96 = scmp.ne.s32.totalorder %s84, %s85
      %p97 = scmp.eq.s32.totalorder %s21, 3
      %p98 = por %p96, %p97
      %p100 = scmp.ne.s32.totalorder %s85, %s99
      %p101 = scmp.eq.s32.totalorder %s21, 0
      %p102 = por %p100, %p101
      %s103 = ssub.s32 %s22, %s34
      %p104 = scmp.eq.s32.totalorder %s103, 0
      %s106 = sadd.s32 %s105, 1
      %s107 = scalar_select %p104, %s105, %s106
      %p110 = pneg %p104
      %p111 = scmp.eq.s32.totalorder %s15, 3
      %p112 = por %p110, %p111
      %p113 = scmp.ne.s32.totalorder %s105, %s108
      %p114 = scmp.eq.s32.totalorder %s15, 0
      %p115 = por %p113, %p114
      %p116 = scmp.ne.s32.totalorder %s105, %s108
      %p117 = scmp.eq.s32.totalorder %s20, 3
      %p118 = por %p116, %p117
      %p119 = scmp.ne.s32.totalorder %s108, %s109
      %p120 = scmp.eq.s32.totalorder %s20, 0
      %p121 = por %p119, %p120
      %p122 = scmp.ne.s32.totalorder %s108, %s109
      %p123 = scmp.eq.s32.totalorder %s21, 3
      %p124 = por %p122, %p123
      %p126 = scmp.ne.s32.totalorder %s109, %s125
      %p127 = scmp.eq.s32.totalorder %s21, 0
      %p128 = por %p126, %p127
      %p129 = scmp.le.s32.totalorder 1, %s15
      %p130 = scmp.lt.s32.totalorder %s15, 5
      %p131 = pnand %p129, %p130
      %p132 = pneg %p131
      // Predicated region
      $region9: #{tpu_custom_call.1} parent=5 // pred_check
        _
      $region10: #{tpu_custom_call.1} parent=5 // pred_check_branch
        %134 = sbr.rel (%p131) target = $region12
      $region11: #{tpu_custom_call.1} parent=5 // pred_region
        %s135 = ssub.s32 %s15, 1
        // Predicated region
        $region13: #{tpu_custom_call.1} parent=11 // pred_check
          %p136 = pneg %p74
        $region14: #{tpu_custom_call.1} parent=11 // pred_check_branch
          %138 = sbr.rel (%p136) target = $region16
        $region15: #{tpu_custom_call.1} parent=11 // pred_region
          _
        $region16: #{tpu_custom_call.1} parent=11 // pred_fallthru
          _
        // Predicated region
        $region17: #{tpu_custom_call.1} parent=11 // pred_check
          %p139 = pneg %p95
        $region18: #{tpu_custom_call.1} parent=11 // pred_check_branch
          %141 = sbr.rel (%p139) target = $region20
        $region19: #{tpu_custom_call.1} parent=11 // pred_region
          _
        $region20: #{tpu_custom_call.1} parent=11 // pred_fallthru
          _
      $region12: #{tpu_custom_call.1} parent=5 // pred_fallthru
        _
      %p142 = scmp.lt.s32.totalorder %s15, 4
      // Predicated region
      $region21: #{tpu_custom_call.1} parent=5 // pred_check
        %p143 = pneg %p142
      $region22: #{tpu_custom_call.1} parent=5 // pred_check_branch
        %145 = sbr.rel (%p143) target = $region24
      $region23: #{tpu_custom_call.1} parent=5 // pred_region
        // Predicated region
        $region25: #{tpu_custom_call.1} parent=23 // pred_check
          %p146 = pneg %p47
        $region26: #{tpu_custom_call.1} parent=23 // pred_check_branch
          %148 = sbr.rel (%p146) target = $region28
        $region27: #{tpu_custom_call.1} parent=23 // pred_region
          %s149 = sand.u32 %s37, 1
          %s150 = scalar_lea.sflag [#allocation4], %s149
          %s151 = sand.u32 %s37, 1
          %s152 = smul.addr %s151, 8
          %s153 = scalar_lea.vmem [#allocation3], %s152
          %s155 = ssub.s32 128, 128
          %156 = vsyncadd %s150, %s155
          %s157 = smul.addr %s22, 2
          %s158 = smul.addr %s157, 64
          %s159 = scalar_lea.hbm %s0, %s158
          %s161 = sshll.u32 %s153, 4
          %s162 = int_to_ptr.vmem [resolvable:$true] %s161
          %164 = dma.hbm_to_vmem [thread:$0]  %s159, 128, %s162, %s150
        $region28: #{tpu_custom_call.1} parent=23 // pred_fallthru
          _
      $region24: #{tpu_custom_call.1} parent=5 // pred_fallthru
        _
      %p165 = scmp.le.s32.totalorder 1, %s15
      %p166 = scmp.lt.s32.totalorder %s15, 5
      %p167 = pnand %p165, %p166
      %p168 = pneg %p167
      // Predicated region
      $region29: #{tpu_custom_call.1} parent=5 // pred_check
        _
      $region30: #{tpu_custom_call.1} parent=5 // pred_check_branch
        %170 = sbr.rel (%p167) target = $region32
      $region31: #{tpu_custom_call.1} parent=5 // pred_region
        %s171 = ssub.s32 %s15, 1
        %s172 = sand.u32 %s40, 1
        %s173 = scalar_lea.sflag [#allocation4], %s172
        %s174 = sand.u32 %s40, 1
        %s175 = smul.addr %s174, 8
        %s176 = scalar_lea.vmem [#allocation3], %s175
        // Predicated region
        $region33: #{tpu_custom_call.1} parent=31 // pred_check
          %p177 = pneg %p53
        $region34: #{tpu_custom_call.1} parent=31 // pred_check_branch
          %179 = sbr.rel (%p177) target = $region36
        $region35: #{tpu_custom_call.1} parent=31 // pred_region
          %180 = dma.done %s173, 128
        $region36: #{tpu_custom_call.1} parent=31 // pred_fallthru
          _
        %s181 = sand.u32 %s40, 1
        %s182 = scalar_lea.sflag [#allocation4], %s181
        %s183 = sand.u32 %s40, 1
        %s184 = smul.addr %s183, 8
        %s185 = scalar_lea.vmem [#allocation3], %s184
        %p186 = pneg %p53
        %p187 = pneg %p50
        %p188 = pneg %p74
        %p189 = pneg %p71
        %p190 = pneg %p95
        %p191 = pneg %p92
        %p192 = pneg %p121
        %p193 = pneg %p118
        %s194 = sand.u32 %s108, 1
        %s195 = scalar_lea.sflag [#allocation5], %s194
        %s196 = sand.u32 %s108, 1
        %s197 = smul.addr %s196, 8
        %s198 = scalar_lea.vmem [#allocation6], %s197
        %p200 = scmp.eq.s32.totalorder %s25, 0
        // Predicated region
        $region37: #{tpu_custom_call.1} parent=31 // pred_check
          %p201 = pneg %p200
        $region38: #{tpu_custom_call.1} parent=31 // pred_check_branch
          %203 = sbr.rel (%p201) target = $region40
        $region39: #{tpu_custom_call.1} parent=31 // pred_region
          %v204 = vld [vmem:[%s176] sm:$0xff]
          %v205 = vld [vmem:[%s1] sm:$0xff]
          %v206 = vadd.f32 %v204, %v205
          %v208 = vcombine.high %v206, %v206
          %v210 = vpack.c.bf16 %v206, %v206
          %v211 = vpack.c.bf16 %v208, %v208
          %v212 = vld [vmem:[%s2] sm:$0xf]
          %v213 = vld [vmem:[%s2 + $0x4] sm:$0x3]
          %v216 = vunpack.c.l.b16 %v212
          %v217 = vunpack.c.l.b16 %v213
          %v218 = vpack.c.b16 %v217, %v216
          %vm219 = vcmask 31744
          %v221 = vsel %vm219, %v218, 0
          %vm223 = vcmask 1041408
          %v225 = vsel %vm223, %v210, 0
          %v228 = vsel %vm223, %v211, 0
          %230 = vmatprep.subr.bf16.mxu0 %v228
          %231 = vmatpush1.bf16.msra.mxu0 %v225
          %232 = vmatprep.subr.bf16.mxu0 0
          %233 = vmatpush1.bf16.msra.mxu0 0
          %234 = vmatprep.subr.bf16.mxu0 0
          %235 = vmatpush1.bf16.msra.mxu0 0
          %236 = vmatprep.subr.bf16.mxu0 0
          %237 = vmatpush1.bf16.msra.mxu0 0
          %238 = vmatprep.subr.bf16.mxu0 0
          %239 = vmatpush1.bf16.msra.mxu0 0
          %240 = vmatprep.subr.bf16.mxu0 0
          %241 = vmatpush1.bf16.msra.mxu0 0
          %242 = vmatprep.subr.bf16.mxu0 0
          %243 = vmatpush1.bf16.msra.mxu0 0
          %244 = vmatprep.subr.bf16.mxu0 0
          %245 = vmatpush1.bf16.msra.mxu0 0
          %246 = vmatprep.subr.bf16.mxu0 0
          %247 = vmatpush1.bf16.msra.mxu0 0
          %248 = vmatprep.subr.bf16.mxu0 0
          %249 = vmatpush1.bf16.msra.mxu0 0
          %250 = vmatprep.subr.bf16.mxu0 0
          %251 = vmatpush1.bf16.msra.mxu0 0
          %252 = vmatprep.subr.bf16.mxu0 0
          %253 = vmatpush1.bf16.msra.mxu0 0
          %254 = vmatprep.subr.bf16.mxu0 0
          %255 = vmatpush1.bf16.msra.mxu0 0
          %256 = vmatprep.subr.bf16.mxu0 0
          %257 = vmatpush1.bf16.msra.mxu0 0
          %258 = vmatprep.subr.bf16.mxu0 0
          %259 = vmatpush1.bf16.msra.mxu0 0
          %260 = vmatprep.subr.bf16.mxu0 0
          %261 = vmatpush1.bf16.msra.mxu0 0
          %262 = vmatprep.mubr.bf16.mxu0 0
          %263 = vmatmul.mubr.bf16.gmra.mrb[0].mxu0 %v221
          %v264 = vpop.f32.mrb[0].mxu0
          %v265 = vadd.f32 0.0, %v264
          %v266 = vpop.f32.mrb[0].mxu0
          %v267 = vadd.f32 0.0, %v266
          %v268 = vpop.f32.mrb[0].mxu0
          %v269 = vadd.f32 0.0, %v268
          %v270 = vpop.f32.mrb[0].mxu0
          %v271 = vadd.f32 0.0, %v270
          %272 = vdwg.mxu0
          %v273 = vpack.c.bf16 %v269, %v265
          %v274 = vpack.c.bf16 %v271, %v267
          %v277 = vunpack.c.l.b16 %v273
          %v278 = vunpack.c.l.b16 %v274
          %v279 = vunpack.c.h.b16 %v273
          %v280 = vunpack.c.h.b16 %v274
          %v281 = vpack.c.b16 %v278, %v277
          %v282 = vpack.c.b16 %v280, %v279
          %285 = vst [vmem:[#allocation2] sm:$0xff] %v281
          %286 = vst [vmem:[#allocation2 + $0x8] sm:$0x33] %v282
          %287 = vst [vmem:[%s198] sm:$0xff] 0.0
        $region40: #{tpu_custom_call.1} parent=31 // pred_fallthru
          _
        %s288 = smul.u32 %s25, 128
        %v289 = vld [vmem:[#allocation2] sm:$0x33]
        %s290 = sshra.s32 %s288, 7
        %s291 = sand.u32 %s288, 127
        %s292 = smul.addr %s290, 4
        %s293 = scalar_lea.vmem [#allocation2], %s292
        %v294 = vld [vmem:[%s293] sm:$0xc]
        %v295 = vld [vmem:[%s293 + $0x8] sm:$0x3]
        %v297 = vunpack.c.l.b16 %v294
        %v298 = vpack.c.b16 %v297, %v297
        %v299 = vrot.slane %v298, 2
        %301 = vxpose.xlu0.c.b16.start [1/8] %v299, 128
        %302 = vxpose.xlu0.c.b16.cont [2/8] 0, 128
        %303 = vxpose.xlu0.c.b16.cont [3/8] 0, 128
        %304 = vxpose.xlu0.c.b16.cont [4/8] 0, 128
        %305 = vxpose.xlu0.c.b16.cont [5/8] 0, 128
        %306 = vxpose.xlu0.c.b16.cont [6/8] 0, 128
        %307 = vxpose.xlu0.c.b16.cont [7/8] 0, 128
        %308 = vxpose.xlu0.c.b16.end [8/8] 0, 128
        %v309 = vpop.trf.xlu0
        %v310 = vpop.trf.xlu0
        %v311 = vpop.trf.xlu0
        %v312 = vpop.trf.xlu0
        %v313 = vpop.trf.xlu0
        %v314 = vpop.trf.xlu0
        %v315 = vpop.trf.xlu0
        %v316 = vpop.trf.xlu0
        %v318 = vunpack.c.l.b16 %v289
        %v319 = vunpack.c.h.b16 %v289
        %v320 = vpack.c.b16 %v318, %v318
        %v321 = vpack.c.b16 %v319, %v319
        %vm322 = vcmask 31744
        %v324 = vsel %vm322, %v309, 0
        %v327 = vsel %vm322, %v310, 0
        %v330 = vsel %vm322, %v311, 0
        %v333 = vsel %vm322, %v312, 0
        %v336 = vsel %vm322, %v313, 0
        %v339 = vsel %vm322, %v314, 0
        %v342 = vsel %vm322, %v315, 0
        %v345 = vsel %vm322, %v316, 0
        %vm347 = vcmask 1041408
        %v349 = vsel %vm347, %v320, 0
        %v352 = vsel %vm347, %v321, 0
        %354 = vmatprep.subr.bf16.mxu0 %v352
        %355 = vmatpush1.bf16.msra.mxu0 %v349
        %356 = vmatprep.subr.bf16.mxu0 0
        %357 = vmatpush1.bf16.msra.mxu0 0
        %358 = vmatprep.subr.bf16.mxu0 0
        %359 = vmatpush1.bf16.msra.mxu0 0
        %360 = vmatprep.subr.bf16.mxu0 0
        %361 = vmatpush1.bf16.msra.mxu0 0
        %362 = vmatprep.subr.bf16.mxu0 0
        %363 = vmatpush1.bf16.msra.mxu0 0
        %364 = vmatprep.subr.bf16.mxu0 0
        %365 = vmatpush1.bf16.msra.mxu0 0
        %366 = vmatprep.subr.bf16.mxu0 0
        %367 = vmatpush1.bf16.msra.mxu0 0
        %368 = vmatprep.subr.bf16.mxu0 0
        %369 = vmatpush1.bf16.msra.mxu0 0
        %370 = vmatprep.subr.bf16.mxu0 0
        %371 = vmatpush1.bf16.msra.mxu0 0
        %372 = vmatprep.subr.bf16.mxu0 0
        %373 = vmatpush1.bf16.msra.mxu0 0
        %374 = vmatprep.subr.bf16.mxu0 0
        %375 = vmatpush1.bf16.msra.mxu0 0
        %376 = vmatprep.subr.bf16.mxu0 0
        %377 = vmatpush1.bf16.msra.mxu0 0
        %378 = vmatprep.subr.bf16.mxu0 0
        %379 = vmatpush1.bf16.msra.mxu0 0
        %380 = vmatprep.subr.bf16.mxu0 0
        %381 = vmatpush1.bf16.msra.mxu0 0
        %382 = vmatprep.subr.bf16.mxu0 0
        %383 = vmatpush1.bf16.msra.mxu0 0
        %384 = vmatprep.subr.bf16.mxu0 0
        %385 = vmatpush1.bf16.msra.mxu0 0
        %386 = vmatprep.mubr.bf16.mxu0 0
        %387 = vmatmul.mubr.bf16.gmra.mrb[0].mxu0 %v324
        %v388 = vpop.f32.mrb[0].mxu0
        %v389 = vadd.f32 0.0, %v388
        %v390 = vpop.f32.mrb[0].mxu0
        %v391 = vadd.f32 0.0, %v390
        %v392 = vpop.f32.mrb[0].mxu0
        %v393 = vadd.f32 0.0, %v392
        %v394 = vpop.f32.mrb[0].mxu0
        %v395 = vadd.f32 0.0, %v394
        %396 = vmatprep.mubr.bf16.mxu0 0
        %397 = vmatmul.mubr.bf16.gmra.mrb[0].mxu0 %v327
        %v398 = vpop.f32.mrb[0].mxu0
        %v399 = vadd.f32 0.0, %v398
        %v400 = vpop.f32.mrb[0].mxu0
        %v401 = vadd.f32 0.0, %v400
        %v402 = vpop.f32.mrb[0].mxu0
        %v403 = vadd.f32 0.0, %v402
        %v404 = vpop.f32.mrb[0].mxu0
        %v405 = vadd.f32 0.0, %v404
        %406 = vmatprep.mubr.bf16.mxu0 0
        %407 = vmatmul.mubr.bf16.gmra.mrb[0].mxu0 %v330
        %v408 = vpop.f32.mrb[0].mxu0
        %v409 = vadd.f32 0.0, %v408
        %v410 = vpop.f32.mrb[0].mxu0
        %v411 = vadd.f32 0.0, %v410
        %v412 = vpop.f32.mrb[0].mxu0
        %v413 = vadd.f32 0.0, %v412
        %v414 = vpop.f32.mrb[0].mxu0
        %v415 = vadd.f32 0.0, %v414
        %416 = vmatprep.mubr.bf16.mxu0 0
        %417 = vmatmul.mubr.bf16.gmra.mrb[0].mxu0 %v333
        %v418 = vpop.f32.mrb[0].mxu0
        %v419 = vadd.f32 0.0, %v418
        %v420 = vpop.f32.mrb[0].mxu0
        %v421 = vadd.f32 0.0, %v420
        %v422 = vpop.f32.mrb[0].mxu0
        %v423 = vadd.f32 0.0, %v422
        %v424 = vpop.f32.mrb[0].mxu0
        %v425 = vadd.f32 0.0, %v424
        %426 = vmatprep.mubr.bf16.mxu0 0
        %427 = vmatmul.mubr.bf16.gmra.mrb[0].mxu0 %v336
        %v428 = vpop.f32.mrb[0].mxu0
        %v429 = vadd.f32 0.0, %v428
        %v430 = vpop.f32.mrb[0].mxu0
        %v431 = vadd.f32 0.0, %v430
        %v432 = vpop.f32.mrb[0].mxu0
        %v433 = vadd.f32 0.0, %v432
        %v434 = vpop.f32.mrb[0].mxu0
        %v435 = vadd.f32 0.0, %v434
        %436 = vmatprep.mubr.bf16.mxu0 0
        %437 = vmatmul.mubr.bf16.gmra.mrb[0].mxu0 %v339
        %v438 = vpop.f32.mrb[0].mxu0
        %v439 = vadd.f32 0.0, %v438
        %v440 = vpop.f32.mrb[0].mxu0
        %v441 = vadd.f32 0.0, %v440
        %v442 = vpop.f32.mrb[0].mxu0
        %v443 = vadd.f32 0.0, %v442
        %v444 = vpop.f32.mrb[0].mxu0
        %v445 = vadd.f32 0.0, %v444
        %446 = vmatprep.mubr.bf16.mxu0 0
        %447 = vmatmul.mubr.bf16.gmra.mrb[0].mxu0 %v342
        %v448 = vpop.f32.mrb[0].mxu0
        %v449 = vadd.f32 0.0, %v448
        %v450 = vpop.f32.mrb[0].mxu0
        %v451 = vadd.f32 0.0, %v450
        %v452 = vpop.f32.mrb[0].mxu0
        %v453 = vadd.f32 0.0, %v452
        %v454 = vpop.f32.mrb[0].mxu0
        %v455 = vadd.f32 0.0, %v454
        %456 = vmatprep.mubr.bf16.mxu0 0
        %457 = vmatmul.mubr.bf16.gmra.mrb[0].mxu0 %v345
        %v458 = vpop.f32.mrb[0].mxu0
        %v459 = vadd.f32 0.0, %v458
        %v460 = vpop.f32.mrb[0].mxu0
        %v461 = vadd.f32 0.0, %v460
        %v462 = vpop.f32.mrb[0].mxu0
        %v463 = vadd.f32 0.0, %v462
        %v464 = vpop.f32.mrb[0].mxu0
        %v465 = vadd.f32 0.0, %v464
        %466 = vdwg.mxu0
        %v467 = vmax.f32 %v389, %v391
        %468 = vmax.xlane.f32.xlu0 %v467
        %v469 = vpop.xlane.xlu0 %468
        %v470 = vmax.f32 %v393, %v395
        %471 = vmax.xlane.f32.xlu0 %v470
        %v472 = vpop.xlane.xlu0 %471
        %v473 = vmax.f32 %v399, %v401
        %474 = vmax.xlane.f32.xlu0 %v473
        %v475 = vpop.xlane.xlu0 %474
        %v476 = vmax.f32 %v403, %v405
        %477 = vmax.xlane.f32.xlu0 %v476
        %v478 = vpop.xlane.xlu0 %477
        %v479 = vmax.f32 %v409, %v411
        %480 = vmax.xlane.f32.xlu0 %v479
        %v481 = vpop.xlane.xlu0 %480
        %v482 = vmax.f32 %v413, %v415
        %483 = vmax.xlane.f32.xlu0 %v482
        %v484 = vpop.xlane.xlu0 %483
        %v485 = vmax.f32 %v419, %v421
        %486 = vmax.xlane.f32.xlu0 %v485
        %v487 = vpop.xlane.xlu0 %486
        %v488 = vmax.f32 %v423, %v425
        %489 = vmax.xlane.f32.xlu0 %v488
        %v490 = vpop.xlane.xlu0 %489
        %v491 = vmax.f32 %v429, %v431
        %492 = vmax.xlane.f32.xlu0 %v491
        %v493 = vpop.xlane.xlu0 %492
        %v494 = vmax.f32 %v433, %v435
        %495 = vmax.xlane.f32.xlu0 %v494
        %v496 = vpop.xlane.xlu0 %495
        %v497 = vmax.f32 %v439, %v441
        %498 = vmax.xlane.f32.xlu0 %v497
        %v499 = vpop.xlane.xlu0 %498
        %v500 = vmax.f32 %v443, %v445
        %501 = vmax.xlane.f32.xlu0 %v500
        %v502 = vpop.xlane.xlu0 %501
        %v503 = vmax.f32 %v449, %v451
        %504 = vmax.xlane.f32.xlu0 %v503
        %v505 = vpop.xlane.xlu0 %504
        %v506 = vmax.f32 %v453, %v455
        %507 = vmax.xlane.f32.xlu0 %v506
        %v508 = vpop.xlane.xlu0 %507
        %v509 = vmax.f32 %v459, %v461
        %510 = vmax.xlane.f32.xlu0 %v509
        %v511 = vpop.xlane.xlu0 %510
        %v512 = vmax.f32 %v463, %v465
        %513 = vmax.xlane.f32.xlu0 %v512
        %v514 = vpop.xlane.xlu0 %513
        %v515 = vsub.f32 %v389, %v469
        %v516 = vsub.f32 %v391, %v469
        %v517 = vsub.f32 %v393, %v472
        %v518 = vsub.f32 %v395, %v472
        %v519 = vsub.f32 %v399, %v475
        %v520 = vsub.f32 %v401, %v475
        %v521 = vsub.f32 %v403, %v478
        %v522 = vsub.f32 %v405, %v478
        %v523 = vsub.f32 %v409, %v481
        %v524 = vsub.f32 %v411, %v481
        %v525 = vsub.f32 %v413, %v484
        %v526 = vsub.f32 %v415, %v484
        %v527 = vsub.f32 %v419, %v487
        %v528 = vsub.f32 %v421, %v487
        %v529 = vsub.f32 %v423, %v490
        %v530 = vsub.f32 %v425, %v490
        %v531 = vsub.f32 %v429, %v493
        %v532 = vsub.f32 %v431, %v493
        %v533 = vsub.f32 %v433, %v496
        %v534 = vsub.f32 %v435, %v496
        %v535 = vsub.f32 %v439, %v499
        %v536 = vsub.f32 %v441, %v499
        %v537 = vsub.f32 %v443, %v502
        %v538 = vsub.f32 %v445, %v502
        %v539 = vsub.f32 %v449, %v505
        %v540 = vsub.f32 %v451, %v505
        %v541 = vsub.f32 %v453, %v508
        %v542 = vsub.f32 %v455, %v508
        %v543 = vsub.f32 %v459, %v511
        %v544 = vsub.f32 %v461, %v511
        %v545 = vsub.f32 %v463, %v514
        %v546 = vsub.f32 %v465, %v514
        %v547 = vmul.f32 %v515, 1.442695
        %v548 = vpow.pop %v547
        %v549 = vmul.f32 %v516, 1.442695
        %v550 = vpow.pop %v549
        %v551 = vmul.f32 %v517, 1.442695
        %v552 = vpow.pop %v551
        %v553 = vmul.f32 %v518, 1.442695
        %v554 = vpow.pop %v553
        %v555 = vmul.f32 %v519, 1.442695
        %v556 = vpow.pop %v555
        %v557 = vmul.f32 %v520, 1.442695
        %v558 = vpow.pop %v557
        %v559 = vmul.f32 %v521, 1.442695
        %v560 = vpow.pop %v559
        %v561 = vmul.f32 %v522, 1.442695
        %v562 = vpow.pop %v561
        %v563 = vmul.f32 %v523, 1.442695
        %v564 = vpow.pop %v563
        %v565 = vmul.f32 %v524, 1.442695
        %v566 = vpow.pop %v565
        %v567 = vmul.f32 %v525, 1.442695
        %v568 = vpow.pop %v567
        %v569 = vmul.f32 %v526, 1.442695
        %v570 = vpow.pop %v569
        %v571 = vmul.f32 %v527, 1.442695
        %v572 = vpow.pop %v571
        %v573 = vmul.f32 %v528, 1.442695
        %v574 = vpow.pop %v573
        %v575 = vmul.f32 %v529, 1.442695
        %v576 = vpow.pop %v575
        %v577 = vmul.f32 %v530, 1.442695
        %v578 = vpow.pop %v577
        %v579 = vmul.f32 %v531, 1.442695
        %v580 = vpow.pop %v579
        %v581 = vmul.f32 %v532, 1.442695
        %v582 = vpow.pop %v581
        %v583 = vmul.f32 %v533, 1.442695
        %v584 = vpow.pop %v583
        %v585 = vmul.f32 %v534, 1.442695
        %v586 = vpow.pop %v585
        %v587 = vmul.f32 %v535, 1.442695
        %v588 = vpow.pop %v587
        %v589 = vmul.f32 %v536, 1.442695
        %v590 = vpow.pop %v589
        %v591 = vmul.f32 %v537, 1.442695
        %v592 = vpow.pop %v591
        %v593 = vmul.f32 %v538, 1.442695
        %v594 = vpow.pop %v593
        %v595 = vmul.f32 %v539, 1.442695
        %v596 = vpow.pop %v595
        %v597 = vmul.f32 %v540, 1.442695
        %v598 = vpow.pop %v597
        %v599 = vmul.f32 %v541, 1.442695
        %v600 = vpow.pop %v599
        %v601 = vmul.f32 %v542, 1.442695
        %v602 = vpow.pop %v601
        %v603 = vmul.f32 %v543, 1.442695
        %v604 = vpow.pop %v603
        %v605 = vmul.f32 %v544, 1.442695
        %v606 = vpow.pop %v605
        %v607 = vmul.f32 %v545, 1.442695
        %v608 = vpow.pop %v607
        %v609 = vmul.f32 %v546, 1.442695
        %v610 = vpow.pop %v609
        %v611 = vadd.f32 %v548, %v550
        %612 = vadd.xlane.f32.xlu0 %v611
        %v613 = vpop.xlane.xlu0 %612
        %v614 = vadd.f32 %v552, %v554
        %615 = vadd.xlane.f32.xlu0 %v614
        %v616 = vpop.xlane.xlu0 %615
        %v617 = vadd.f32 %v556, %v558
        %618 = vadd.xlane.f32.xlu0 %v617
        %v619 = vpop.xlane.xlu0 %618
        %v620 = vadd.f32 %v560, %v562
        %621 = vadd.xlane.f32.xlu0 %v620
        %v622 = vpop.xlane.xlu0 %621
        %v623 = vadd.f32 %v564, %v566
        %624 = vadd.xlane.f32.xlu0 %v623
        %v625 = vpop.xlane.xlu0 %624
        %v626 = vadd.f32 %v568, %v570
        %627 = vadd.xlane.f32.xlu0 %v626
        %v628 = vpop.xlane.xlu0 %627
        %v629 = vadd.f32 %v572, %v574
        %630 = vadd.xlane.f32.xlu0 %v629
        %v631 = vpop.xlane.xlu0 %630
        %v632 = vadd.f32 %v576, %v578
        %633 = vadd.xlane.f32.xlu0 %v632
        %v634 = vpop.xlane.xlu0 %633
        %v635 = vadd.f32 %v580, %v582
        %636 = vadd.xlane.f32.xlu0 %v635
        %v637 = vpop.xlane.xlu0 %636
        %v638 = vadd.f32 %v584, %v586
        %639 = vadd.xlane.f32.xlu0 %v638
        %v640 = vpop.xlane.xlu0 %639
        %v641 = vadd.f32 %v588, %v590
        %642 = vadd.xlane.f32.xlu0 %v641
        %v643 = vpop.xlane.xlu0 %642
        %v644 = vadd.f32 %v592, %v594
        %645 = vadd.xlane.f32.xlu0 %v644
        %v646 = vpop.xlane.xlu0 %645
        %v647 = vadd.f32 %v596, %v598
        %648 = vadd.xlane.f32.xlu0 %v647
        %v649 = vpop.xlane.xlu0 %648
        %v650 = vadd.f32 %v600, %v602
        %651 = vadd.xlane.f32.xlu0 %v650
        %v652 = vpop.xlane.xlu0 %651
        %v653 = vadd.f32 %v604, %v606
        %654 = vadd.xlane.f32.xlu0 %v653
        %v655 = vpop.xlane.xlu0 %654
        %v656 = vadd.f32 %v608, %v610
        %657 = vadd.xlane.f32.xlu0 %v656
        %v658 = vpop.xlane.xlu0 %657
        %v659 = vrcp.pop %v613
        %v660 = vrcp.pop %v616
        %v661 = vrcp.pop %v619
        %v662 = vrcp.pop %v622
        %v663 = vrcp.pop %v625
        %v664 = vrcp.pop %v628
        %v665 = vrcp.pop %v631
        %v666 = vrcp.pop %v634
        %v667 = vrcp.pop %v637
        %v668 = vrcp.pop %v640
        %v669 = vrcp.pop %v643
        %v670 = vrcp.pop %v646
        %v671 = vrcp.pop %v649
        %v672 = vrcp.pop %v652
        %v673 = vrcp.pop %v655
        %v674 = vrcp.pop %v658
        %v675 = vmul.f32 %v548, %v659
        %v676 = vmul.f32 %v550, %v659
        %v677 = vmul.f32 %v552, %v660
        %v678 = vmul.f32 %v554, %v660
        %v679 = vmul.f32 %v556, %v661
        %v680 = vmul.f32 %v558, %v661
        %v681 = vmul.f32 %v560, %v662
        %v682 = vmul.f32 %v562, %v662
        %v683 = vmul.f32 %v564, %v663
        %v684 = vmul.f32 %v566, %v663
        %v685 = vmul.f32 %v568, %v664
        %v686 = vmul.f32 %v570, %v664
        %v687 = vmul.f32 %v572, %v665
        %v688 = vmul.f32 %v574, %v665
        %v689 = vmul.f32 %v576, %v666
        %v690 = vmul.f32 %v578, %v666
        %v691 = vmul.f32 %v580, %v667
        %v692 = vmul.f32 %v582, %v667
        %v693 = vmul.f32 %v584, %v668
        %v694 = vmul.f32 %v586, %v668
        %v695 = vmul.f32 %v588, %v669
        %v696 = vmul.f32 %v590, %v669
        %v697 = vmul.f32 %v592, %v670
        %v698 = vmul.f32 %v594, %v670
        %v699 = vmul.f32 %v596, %v671
        %v700 = vmul.f32 %v598, %v671
        %v701 = vmul.f32 %v600, %v672
        %v702 = vmul.f32 %v602, %v672
        %v703 = vmul.f32 %v604, %v673
        %v704 = vmul.f32 %v606, %v673
        %v705 = vmul.f32 %v608, %v674
        %v706 = vmul.f32 %v610, %v674
        %v707 = vpack.c.bf16 %v677, %v675
        %v708 = vpack.c.bf16 %v678, %v676
        %v709 = vpack.c.bf16 %v681, %v679
        %v710 = vpack.c.bf16 %v682, %v680
        %v711 = vpack.c.bf16 %v685, %v683
        %v712 = vpack.c.bf16 %v686, %v684
        %v713 = vpack.c.bf16 %v689, %v687
        %v714 = vpack.c.bf16 %v690, %v688
        %v715 = vpack.c.bf16 %v693, %v691
        %v716 = vpack.c.bf16 %v694, %v692
        %v717 = vpack.c.bf16 %v697, %v695
        %v718 = vpack.c.bf16 %v698, %v696
        %v719 = vpack.c.bf16 %v701, %v699
        %v720 = vpack.c.bf16 %v702, %v700
        %v721 = vpack.c.bf16 %v705, %v703
        %v722 = vpack.c.bf16 %v706, %v704
        %v723 = vld [vmem:[%s198] sm:$0xff]
        %724 = vmatprep.subr.bf16.mxu0 %v708
        %725 = vmatpush1.bf16.msra.mxu0 %v707
        %726 = vmatprep.subr.bf16.mxu0 %v710
        %727 = vmatpush1.bf16.msra.mxu0 %v709
        %728 = vmatprep.subr.bf16.mxu0 %v712
        %729 = vmatpush1.bf16.msra.mxu0 %v711
        %730 = vmatprep.subr.bf16.mxu0 %v714
        %731 = vmatpush1.bf16.msra.mxu0 %v713
        %732 = vmatprep.subr.bf16.mxu0 %v716
        %733 = vmatpush1.bf16.msra.mxu0 %v715
        %734 = vmatprep.subr.bf16.mxu0 %v718
        %735 = vmatpush1.bf16.msra.mxu0 %v717
        %736 = vmatprep.subr.bf16.mxu0 %v720
        %737 = vmatpush1.bf16.msra.mxu0 %v719
        %738 = vmatprep.subr.bf16.mxu0 %v722
        %739 = vmatpush1.bf16.msra.mxu0 %v721
        %740 = vmatprep.subr.bf16.mxu0 0
        %741 = vmatpush1.bf16.msra.mxu0 0
        %742 = vmatprep.subr.bf16.mxu0 0
        %743 = vmatpush1.bf16.msra.mxu0 0
        %744 = vmatprep.subr.bf16.mxu0 0
        %745 = vmatpush1.bf16.msra.mxu0 0
        %746 = vmatprep.subr.bf16.mxu0 0
        %747 = vmatpush1.bf16.msra.mxu0 0
        %748 = vmatprep.subr.bf16.mxu0 0
        %749 = vmatpush1.bf16.msra.mxu0 0
        %750 = vmatprep.subr.bf16.mxu0 0
        %751 = vmatpush1.bf16.msra.mxu0 0
        %752 = vmatprep.subr.bf16.mxu0 0
        %753 = vmatpush1.bf16.msra.mxu0 0
        %754 = vmatprep.subr.bf16.mxu0 0
        %755 = vmatpush1.bf16.msra.mxu0 0
        %756 = vmatprep.mubr.bf16.mxu0 0
        %757 = vmatmul.mubr.bf16.gmra.mrb[0].mxu0 %v295
        %v758 = vpop.f32.mrb[0].mxu0
        %v759 = vadd.f32 0.0, %v758
        %v760 = vpop.f32.mrb[0].mxu0
        %v761 = vadd.f32 0.0, %v760
        %v762 = vpop.f32.mrb[0].mxu0
        %v763 = vpop.f32.mrb[0].mxu0
        %764 = vdwg.mxu0
        %v767 = vcombine.low %v759, %v761
        %v769 = vadd.f32 %v723, %v767
        %770 = vst [vmem:[%s198] sm:$0xff] %v769
        %s771 = sand.u32 %s108, 1
        %s772 = scalar_lea.sflag [#allocation5], %s771
        %s773 = sand.u32 %s108, 1
        %s774 = smul.addr %s773, 8
        %s775 = scalar_lea.vmem [#allocation6], %s774
        // Predicated region
        $region41: #{tpu_custom_call.1} parent=31 // pred_check
          %p776 = pneg %p118
        $region42: #{tpu_custom_call.1} parent=31 // pred_check_branch
          %778 = sbr.rel (%p776) target = $region44
        $region43: #{tpu_custom_call.1} parent=31 // pred_region
          %s780 = ssub.s32 128, 128
          %781 = vsyncadd %s772, %s780
          %s782 = smul.addr %s24, 2
          %s783 = smul.addr %s782, 64
          %s784 = scalar_lea.hbm %s3, %s783
          %s786 = sshll.u32 %s775, 4
          %s787 = int_to_ptr.vmem [resolvable:$true] %s786
          %789 = dma.vmem_to_hbm [thread:$0]  %s787, 128, %s784, %s772
        $region44: #{tpu_custom_call.1} parent=31 // pred_fallthru
          _
      $region32: #{tpu_custom_call.1} parent=5 // pred_fallthru
        _
      %p790 = scmp.le.s32.totalorder 2, %s15
      // Predicated region
      $region45: #{tpu_custom_call.1} parent=5 // pred_check
        %p791 = pneg %p790
      $region46: #{tpu_custom_call.1} parent=5 // pred_check_branch
        %793 = sbr.rel (%p791) target = $region48
      $region47: #{tpu_custom_call.1} parent=5 // pred_region
        %s794 = ssub.s32 %s15, 2
        // Predicated region
        $region49: #{tpu_custom_call.1} parent=47 // pred_check
          %p795 = pneg %p124
        $region50: #{tpu_custom_call.1} parent=47 // pred_check_branch
          %797 = sbr.rel (%p795) target = $region52
        $region51: #{tpu_custom_call.1} parent=47 // pred_region
          %s798 = sand.u32 %s109, 1
          %s799 = scalar_lea.sflag [#allocation5], %s798
          %s800 = sand.u32 %s109, 1
          %s801 = smul.addr %s800, 8
          %s802 = scalar_lea.vmem [#allocation6], %s801
          %803 = dma.done %s799, 128
        $region52: #{tpu_custom_call.1} parent=47 // pred_fallthru
          _
      $region48: #{tpu_custom_call.1} parent=5 // pred_fallthru
        _
    $region6: #{tpu_custom_call.1} parent=1 // loop_footer
      %s19 = sadd.s32 1, %s15
    $region7: #{tpu_custom_call.1} parent=1 // loop_footer_branch
      %14 = sbr.rel target = $region3
    $region8: #{tpu_custom_call.1} parent=1 // loop_exit
      _
    %804 = vsyncpa [#allocation4], 1
    %s805 = scalar_lea.sflag [#allocation4], 1
    %806 = vsyncpa %s805, 1
    %807 = vsyncpa [#allocation5], 1
    %s808 = scalar_lea.sflag [#allocation5], 1
    %809 = vsyncpa %s808, 1

</llo_original>
